<compile_context>
chip_gen: v7x
topology: tpu7x:2x2x1
jax: 0.10.0
libtpu: 0.0.40
codegen_flags: <defaults>
</compile_context>

<pallas_src>
import jax
import jax.numpy as jnp
from jax.experimental import pallas as pl
from jax.experimental.pallas import tpu as pltpu


def _pass1_kernel(patch_ref, w_ref, y_ref, ext_ref, sum_ref, ssq_ref):
    """Conv matmul + per-tile partial BN stats + 2x2 max pool for one HW tile."""
    # main branch conv: (Cmain, K) @ (K, tile) on the MXU, f32 accumulation.
    y = jnp.dot(w_ref[...], patch_ref[...], preferred_element_type=jnp.float32)
    y_ref[...] = y

    # ext branch: MaxPool2d(2, 2).  Tap order puts the four taps that coincide
    # with the 2x2 pool window first, so the pool never touches conv zero
    # padding and is a max over the leading 4*Cin rows already in VMEM.
    cin = ext_ref.shape[0]
    p = patch_ref
    ext_ref[...] = jnp.maximum(
        jnp.maximum(p[0 * cin:1 * cin, :], p[1 * cin:2 * cin, :]),
        jnp.maximum(p[2 * cin:3 * cin, :], p[3 * cin:4 * cin, :]))

    # Per-tile partial BatchNorm statistics (reduced in XLA).  Keeps both grid
    # axes "parallel" (v7x megacore) instead of a serialized accumulator.
    sum_ref[...] = jnp.sum(y, axis=1, keepdims=True)
    ssq_ref[...] = jnp.sum(y * y, axis=1, keepdims=True)


def _pass2_kernel(y_ref, ext_ref, scale_ref, shift_ref, alpha_ref, out_ref):
    """Folded BN affine + PReLU on the main branch, fused channel concat."""
    z = y_ref[...] * scale_ref[...] + shift_ref[...]
    a = alpha_ref[0]
    main = jnp.where(z > 0, z, a * z)
    # Single full-block, lane-dense store of the already-concatenated channels.
    out_ref[...] = jnp.concatenate([main, ext_ref[...]], axis=0)


def _pick_hw_tile(ohw, max_tile):
    """Largest multiple of 128 dividing OH*OW and <= max_tile, else OH*OW."""
    best = None
    cand = 128
    limit = min(ohw, max_tile)
    while cand <= limit:
        if ohw % cand == 0:
            best = cand
        cand += 128
    return best if best is not None else ohw


def initial_block(x_nchw, conv_w, gamma, beta, alpha, *, eps=1e-5,
                  max_tile=16384):
    """x_nchw: (N, Cin, H, W) f32.  conv_w: (Cmain, Cin, 3, 3).  Returns NCHW."""
    N, Cin, H, W = x_nchw.shape
    Cmain = conv_w.shape[0]
    Cout = Cmain + Cin
    assert H % 2 == 0 and W % 2 == 0, "InitialBlock needs even spatial dims"
    OH, OW = H // 2, W // 2                 # conv & pool output size
    OHW = OH * OW
    P = N * OHW
    K = 9 * Cin

    x = x_nchw.astype(jnp.float32)

    # im2col, tap-major / channel-minor, per-image pixels on lanes.  The four
    # taps matching the 2x2 max-pool window come first (see _pass1_kernel).
    tap_order = ((1, 1), (1, 2), (2, 1), (2, 2),        # == 2x2 pool window
                 (0, 0), (0, 1), (0, 2), (1, 0), (2, 0))
    xp = jnp.pad(x, ((0, 0), (0, 0), (1, 1), (1, 1)))
    taps = [xp[:, :, kh:kh + 2 * OH:2, kw:kw + 2 * OW:2]
            for kh, kw in tap_order]                     # 9 x (N, Cin, OH, OW)
    patches = jnp.stack(taps, axis=1).reshape(N, K, OHW)  # (N, 9*Cin, OH*OW)

    # weight rows reordered to match the tap order: (Cmain, 9, Cin) -> (Cmain, K)
    w_t = jnp.stack([conv_w[:, :, kh, kw] for kh, kw in tap_order],
                    axis=1).astype(jnp.float32).reshape(Cmain, K)

    tile = _pick_hw_tile(OHW, max_tile)
    n_hw = OHW // tile
    grid = (N, n_hw)

    cparams = pltpu.CompilerParams(
        dimension_semantics=("parallel", "parallel"),
        vmem_limit_bytes=32 * 1024 * 1024)

    # ---- pass 1: conv matmul + partial BN stats + max pool ------------------
    y_raw, ext_t, psum, pssq = pl.pallas_call(
        _pass1_kernel,
        out_shape=(jax.ShapeDtypeStruct((N, Cmain, OHW), jnp.float32),
                   jax.ShapeDtypeStruct((N, Cin, OHW), jnp.float32),
                   jax.ShapeDtypeStruct((N * n_hw, Cmain, 1), jnp.float32),
                   jax.ShapeDtypeStruct((N * n_hw, Cmain, 1), jnp.float32)),
        grid=grid,
        in_specs=[pl.BlockSpec((None, K, tile), lambda n, t: (n, 0, t)),
                  pl.BlockSpec((Cmain, K), lambda n, t: (0, 0))],
        out_specs=(pl.BlockSpec((None, Cmain, tile), lambda n, t: (n, 0, t)),
                   pl.BlockSpec((None, Cin, tile), lambda n, t: (n, 0, t)),
                   pl.BlockSpec((None, Cmain, 1),
                                lambda n, t: (n * n_hw + t, 0, 0)),
                   pl.BlockSpec((None, Cmain, 1),
                                lambda n, t: (n * n_hw + t, 0, 0))),
        compiler_params=cparams,
    )(patches, w_t)

    # Fold BN (training-mode batch statistics) into one scale/shift per channel.
    total = jnp.float32(P)
    mean = jnp.sum(psum[:, :, 0], axis=0) / total                    # (Cmain,)
    var = jnp.maximum(jnp.sum(pssq[:, :, 0], axis=0) / total - mean * mean, 0.0)
    scale = gamma.astype(jnp.float32) * jax.lax.rsqrt(var + eps)
    shift = beta.astype(jnp.float32) - mean * scale

    # ---- pass 2: normalize + PReLU + fused channel concat, final layout -----
    out = pl.pallas_call(
        _pass2_kernel,
        out_shape=jax.ShapeDtypeStruct((N, Cout, OHW), jnp.float32),
        grid=grid,
        in_specs=[pl.BlockSpec((None, Cmain, tile), lambda n, t: (n, 0, t)),
                  pl.BlockSpec((None, Cin, tile), lambda n, t: (n, 0, t)),
                  pl.BlockSpec((Cmain, 1), lambda n, t: (0, 0)),
                  pl.BlockSpec((Cmain, 1), lambda n, t: (0, 0)),
                  pl.BlockSpec(memory_space=pltpu.MemorySpace.SMEM)],
        out_specs=pl.BlockSpec((None, Cout, tile), lambda n, t: (n, 0, t)),
        compiler_params=cparams,
    )(y_raw, ext_t, scale.reshape(Cmain, 1), shift.reshape(Cmain, 1),
      jnp.asarray(alpha, jnp.float32).reshape(1))

    # (N, Cout, OH*OW) -> (N, Cout, OH, OW): free reshape, no transpose/concat.
    return out.reshape(N, Cout, OH, OW)


def reference(x_nchw, conv_w, gamma, beta, alpha, eps=1e-5):
    main = jax.lax.conv_general_dilated(
        x_nchw, conv_w, window_strides=(2, 2), padding=((1, 1), (1, 1)),
        dimension_numbers=("NCHW", "OIHW", "NCHW"))
    mean = main.mean(axis=(0, 2, 3), keepdims=True)
    var = ((main - mean) ** 2).mean(axis=(0, 2, 3), keepdims=True)
    main = (main - mean) * jax.lax.rsqrt(var + eps)
    main = main * gamma.reshape(1, -1, 1, 1) + beta.reshape(1, -1, 1, 1)
    main = jnp.where(main > 0, main, alpha * main)
    ext = jax.lax.reduce_window(x_nchw, -jnp.inf, jax.lax.max,
                                (1, 1, 2, 2), (1, 1, 2, 2), "VALID")
    return jnp.concatenate([main, ext], axis=1)


if __name__ == "__main__":
    # Small shapes consistent with ENet's InitialBlock: input_ch=3, output_ch=16
    N, Cin, H, W = 2, 3, 16, 16
    Cout = 16
    Cmain = Cout - 3

    key = jax.random.PRNGKey(0)
    kx, kw = jax.random.split(key)
    x = jax.random.normal(kx, (N, Cin, H, W), dtype=jnp.float32)

    # Deterministic parameter init (matches PyTorch default BN/PReLU init)
    conv_w = 0.1 * jax.random.normal(kw, (Cmain, Cin, 3, 3), dtype=jnp.float32)
    gamma = jnp.ones((Cmain,), jnp.float32)       # BatchNorm weight
    beta = jnp.zeros((Cmain,), jnp.float32)       # BatchNorm bias
    alpha = jnp.array(0.25, jnp.float32)          # PReLU parameter

    out = jax.jit(initial_block)(x, conv_w, gamma, beta, alpha)
    out = jax.block_until_ready(out)

    ref = reference(x, conv_w, gamma, beta, alpha)
    assert out.shape == (N, Cout, H // 2, W // 2), out.shape
    assert jnp.allclose(out, ref, atol=1e-4, rtol=1e-4), float(jnp.abs(out - ref).max())

    print("KERNEL_OK")
</pallas_src>

<mosaic_0001>
module attributes {stable_mosaic.version = 11 : i64} {
  func.func @_pass1_kernel(%arg0: i32, %arg1: i32, %arg2: memref<1x27x64xf32, #tpu.memory_space<vmem>>, %arg3: memref<13x27xf32, #tpu.memory_space<vmem>>, %arg4: memref<1x13x64xf32, #tpu.memory_space<vmem>>, %arg5: memref<1x3x64xf32, #tpu.memory_space<vmem>>, %arg6: memref<1x13x1xf32, #tpu.memory_space<vmem>>, %arg7: memref<1x13x1xf32, #tpu.memory_space<vmem>>) attributes {dimension_semantics = [#tpu.dimension_semantics<parallel>, #tpu.dimension_semantics<parallel>], iteration_bounds = array<i64: 2, 1>, scalar_prefetch = 0 : i64, scratch_operands = 0 : i64, tpu.core_type = #tpu.core_type<tc>, window_params = [{transform_indices = @transform_0, window_bounds = array<i64: 1, 27, 64>}, {pipeline_mode = #tpu.pipeline_mode<synchronous>, transform_indices = @transform_1, window_bounds = array<i64: 13, 27>}, {transform_indices = @transform_2, window_bounds = array<i64: 1, 13, 64>}, {transform_indices = @transform_3, window_bounds = array<i64: 1, 3, 64>}, {transform_indices = @transform_4, window_bounds = array<i64: 1, 13, 1>}, {transform_indices = @transform_5, window_bounds = array<i64: 1, 13, 1>}]} {
    %c0 = arith.constant 0 : index
    %c0_0 = arith.constant 0 : index
    %0 = vector.load %arg3[%c0, %c0_0] : memref<13x27xf32, #tpu.memory_space<vmem>>, vector<13x27xf32>
    %c0_1 = arith.constant 0 : index
    %c0_2 = arith.constant 0 : index
    %c0_3 = arith.constant 0 : index
    %1 = vector.load %arg2[%c0_1, %c0_2, %c0_3] : memref<1x27x64xf32, #tpu.memory_space<vmem>>, vector<1x27x64xf32>
    %2 = vector.shape_cast %1 : vector<1x27x64xf32> to vector<27x64xf32>
    %cst = arith.constant dense<0.000000e+00> : vector<13x64xf32>
    %3 = tpu.matmul %0, %2, %cst {dimension_numbers = #tpu.dot_dimension_numbers<[1], [0], [0], [1], [0, 0, 1, 1], [], []>} : vector<13x27xf32>, vector<27x64xf32>, vector<13x64xf32> -> vector<13x64xf32>
    %c0_4 = arith.constant 0 : index
    %c0_5 = arith.constant 0 : index
    %c0_6 = arith.constant 0 : index
    %4 = vector.load %arg4[%c0_4, %c0_5, %c0_6] : memref<1x13x64xf32, #tpu.memory_space<vmem>>, vector<1x13x64xf32>
    %5 = vector.shape_cast %4 : vector<1x13x64xf32> to vector<13x64xf32>
    %6 = vector.shape_cast %3 : vector<13x64xf32> to vector<1x13x64xf32>
    tpu.vector_store %arg4[%c0_4, %c0_5, %c0_6], %6 {strides = array<i32>} : memref<1x13x64xf32, #tpu.memory_space<vmem>>, vector<1x13x64xf32>,
    %c0_7 = arith.constant 0 : index
    %c0_8 = arith.constant 0 : index
    %c0_9 = arith.constant 0 : index
    %7 = vector.load %arg2[%c0_7, %c0_8, %c0_9] : memref<1x27x64xf32, #tpu.memory_space<vmem>>, vector<1x3x64xf32>
    %8 = vector.shape_cast %7 : vector<1x3x64xf32> to vector<3x64xf32>
    %c0_10 = arith.constant 0 : index
    %c3 = arith.constant 3 : index
    %c0_11 = arith.constant 0 : index
    %9 = vector.load %arg2[%c0_10, %c3, %c0_11] : memref<1x27x64xf32, #tpu.memory_space<vmem>>, vector<1x3x64xf32>
    %10 = vector.shape_cast %9 : vector<1x3x64xf32> to vector<3x64xf32>
    %11 = arith.maximumf %8, %10 : vector<3x64xf32>
    %c0_12 = arith.constant 0 : index
    %c6 = arith.constant 6 : index
    %c0_13 = arith.constant 0 : index
    %12 = vector.load %arg2[%c0_12, %c6, %c0_13] : memref<1x27x64xf32, #tpu.memory_space<vmem>>, vector<1x3x64xf32>
    %13 = vector.shape_cast %12 : vector<1x3x64xf32> to vector<3x64xf32>
    %c0_14 = arith.constant 0 : index
    %c9 = arith.constant 9 : index
    %c0_15 = arith.constant 0 : index
    %14 = vector.load %arg2[%c0_14, %c9, %c0_15] : memref<1x27x64xf32, #tpu.memory_space<vmem>>, vector<1x3x64xf32>
    %15 = vector.shape_cast %14 : vector<1x3x64xf32> to vector<3x64xf32>
    %16 = arith.maximumf %13, %15 : vector<3x64xf32>
    %17 = arith.maximumf %11, %16 : vector<3x64xf32>
    %c0_16 = arith.constant 0 : index
    %c0_17 = arith.constant 0 : index
    %c0_18 = arith.constant 0 : index
    %18 = vector.load %arg5[%c0_16, %c0_17, %c0_18] : memref<1x3x64xf32, #tpu.memory_space<vmem>>, vector<1x3x64xf32>
    %19 = vector.shape_cast %18 : vector<1x3x64xf32> to vector<3x64xf32>
    %20 = vector.shape_cast %17 : vector<3x64xf32> to vector<1x3x64xf32>
    tpu.vector_store %arg5[%c0_16, %c0_17, %c0_18], %20 {strides = array<i32>} : memref<1x3x64xf32, #tpu.memory_space<vmem>>, vector<1x3x64xf32>,
    %cst_19 = arith.constant dense<0.000000e+00> : vector<13xf32>
    %21 = vector.multi_reduction <add>, %3, %cst_19 [1] : vector<13x64xf32> to vector<13xf32>
    %22 = vector.shape_cast %21 : vector<13xf32> to vector<13x1xf32>
    %c0_20 = arith.constant 0 : index
    %c0_21 = arith.constant 0 : index
    %c0_22 = arith.constant 0 : index
    %23 = vector.load %arg6[%c0_20, %c0_21, %c0_22] : memref<1x13x1xf32, #tpu.memory_space<vmem>>, vector<1x13x1xf32>
    %24 = vector.shape_cast %23 : vector<1x13x1xf32> to vector<13x1xf32>
    %25 = vector.shape_cast %22 : vector<13x1xf32> to vector<1x13x1xf32>
    tpu.vector_store %arg6[%c0_20, %c0_21, %c0_22], %25 {strides = array<i32>} : memref<1x13x1xf32, #tpu.memory_space<vmem>>, vector<1x13x1xf32>,
    %26 = arith.mulf %3, %3 : vector<13x64xf32>
    %cst_23 = arith.constant dense<0.000000e+00> : vector<13xf32>
    %27 = vector.multi_reduction <add>, %26, %cst_23 [1] : vector<13x64xf32> to vector<13xf32>
    %28 = vector.shape_cast %27 : vector<13xf32> to vector<13x1xf32>
    %c0_24 = arith.constant 0 : index
    %c0_25 = arith.constant 0 : index
    %c0_26 = arith.constant 0 : index
    %29 = vector.load %arg7[%c0_24, %c0_25, %c0_26] : memref<1x13x1xf32, #tpu.memory_space<vmem>>, vector<1x13x1xf32>
    %30 = vector.shape_cast %29 : vector<1x13x1xf32> to vector<13x1xf32>
    %31 = vector.shape_cast %28 : vector<13x1xf32> to vector<1x13x1xf32>
    tpu.vector_store %arg7[%c0_24, %c0_25, %c0_26], %31 {strides = array<i32>} : memref<1x13x1xf32, #tpu.memory_space<vmem>>, vector<1x13x1xf32>,
    return
  }
  func.func @transform_0(%arg0: i32, %arg1: i32) -> (i32, i32, i32) {
    %c0_i32 = arith.constant 0 : i32
    %c0_i32_0 = arith.constant 0 : i32
    return %arg0, %c0_i32, %arg1 : i32, i32, i32
  }
  func.func @transform_1(%arg0: i32, %arg1: i32) -> (i32, i32) {
    %c0_i32 = arith.constant 0 : i32
    %c0_i32_0 = arith.constant 0 : i32
    %c0_i32_1 = arith.constant 0 : i32
    return %c0_i32, %c0_i32_0 : i32, i32
  }
  func.func @transform_2(%arg0: i32, %arg1: i32) -> (i32, i32, i32) {
    %c0_i32 = arith.constant 0 : i32
    %c0_i32_0 = arith.constant 0 : i32
    return %arg0, %c0_i32, %arg1 : i32, i32, i32
  }
  func.func @transform_3(%arg0: i32, %arg1: i32) -> (i32, i32, i32) {
    %c0_i32 = arith.constant 0 : i32
    %c0_i32_0 = arith.constant 0 : i32
    return %arg0, %c0_i32, %arg1 : i32, i32, i32
  }
  func.func @transform_4(%arg0: i32, %arg1: i32) -> (i32, i32, i32) {
    %c1_i32 = arith.constant 1 : i32
    %0 = arith.muli %arg0, %c1_i32 : i32
    %1 = arith.addi %0, %arg1 : i32
    %c0_i32 = arith.constant 0 : i32
    %c0_i32_0 = arith.constant 0 : i32
    %c0_i32_1 = arith.constant 0 : i32
    return %1, %c0_i32, %c0_i32_0 : i32, i32, i32
  }
  func.func @transform_5(%arg0: i32, %arg1: i32) -> (i32, i32, i32) {
    %c1_i32 = arith.constant 1 : i32
    %0 = arith.muli %arg0, %c1_i32 : i32
    %1 = arith.addi %0, %arg1 : i32
    %c0_i32 = arith.constant 0 : i32
    %c0_i32_0 = arith.constant 0 : i32
    %c0_i32_1 = arith.constant 0 : i32
    return %1, %c0_i32, %c0_i32_0 : i32, i32, i32
  }
}

module attributes {stable_mosaic.version = 11 : i64} {
  func.func @_pass2_kernel(%arg0: i32, %arg1: i32, %arg2: memref<1x13x64xf32, #tpu.memory_space<vmem>>, %arg3: memref<1x3x64xf32, #tpu.memory_space<vmem>>, %arg4: memref<13x1xf32, #tpu.memory_space<vmem>>, %arg5: memref<13x1xf32, #tpu.memory_space<vmem>>, %arg6: memref<1xf32, #tpu.memory_space<smem>>, %arg7: memref<1x16x64xf32, #tpu.memory_space<vmem>>) attributes {dimension_semantics = [#tpu.dimension_semantics<parallel>, #tpu.dimension_semantics<parallel>], iteration_bounds = array<i64: 2, 1>, scalar_prefetch = 0 : i64, scratch_operands = 0 : i64, tpu.core_type = #tpu.core_type<tc>, window_params = [{transform_indices = @transform_0, window_bounds = array<i64: 1, 13, 64>}, {transform_indices = @transform_1, window_bounds = array<i64: 1, 3, 64>}, {pipeline_mode = #tpu.pipeline_mode<synchronous>, transform_indices = @transform_2, window_bounds = array<i64: 13, 1>}, {pipeline_mode = #tpu.pipeline_mode<synchronous>, transform_indices = @transform_3, window_bounds = array<i64: 13, 1>}, {transform_indices = @transform_4, window_bounds = array<i64: 1>}, {transform_indices = @transform_5, window_bounds = array<i64: 1, 16, 64>}]} {
    %c0 = arith.constant 0 : index
    %c0_0 = arith.constant 0 : index
    %c0_1 = arith.constant 0 : index
    %0 = vector.load %arg2[%c0, %c0_0, %c0_1] : memref<1x13x64xf32, #tpu.memory_space<vmem>>, vector<1x13x64xf32>
    %1 = vector.shape_cast %0 : vector<1x13x64xf32> to vector<13x64xf32>
    %c0_2 = arith.constant 0 : index
    %c0_3 = arith.constant 0 : index
    %2 = vector.load %arg4[%c0_2, %c0_3] : memref<13x1xf32, #tpu.memory_space<vmem>>, vector<13x1xf32>
    %3 = vector.broadcast %2 : vector<13x1xf32> to vector<13x64xf32>
    %4 = arith.mulf %1, %3 : vector<13x64xf32>
    %c0_4 = arith.constant 0 : index
    %c0_5 = arith.constant 0 : index
    %5 = vector.load %arg5[%c0_4, %c0_5] : memref<13x1xf32, #tpu.memory_space<vmem>>, vector<13x1xf32>
    %6 = vector.broadcast %5 : vector<13x1xf32> to vector<13x64xf32>
    %7 = arith.addf %4, %6 : vector<13x64xf32>
    %c0_6 = arith.constant 0 : index
    %8 = memref.load %arg6[%c0_6] : memref<1xf32, #tpu.memory_space<smem>>
    %cst = arith.constant 0.000000e+00 : f32
    %9 = vector.broadcast %cst : f32 to vector<13x64xf32>
    %10 = arith.cmpf ogt, %7, %9 : vector<13x64xf32>
    %11 = vector.broadcast %8 : f32 to vector<13x64xf32>
    %12 = arith.mulf %11, %7 : vector<13x64xf32>
    %13 = arith.select %10, %7, %12 : vector<13x64xi1>, vector<13x64xf32>
    %c0_7 = arith.constant 0 : index
    %c0_8 = arith.constant 0 : index
    %c0_9 = arith.constant 0 : index
    %14 = vector.load %arg3[%c0_7, %c0_8, %c0_9] : memref<1x3x64xf32, #tpu.memory_space<vmem>>, vector<1x3x64xf32>
    %15 = vector.shape_cast %14 : vector<1x3x64xf32> to vector<3x64xf32>
    %16 = tpu.concatenate %13, %15 in 0 : vector<13x64xf32>, vector<3x64xf32> -> vector<16x64xf32>
    %c0_10 = arith.constant 0 : index
    %c0_11 = arith.constant 0 : index
    %c0_12 = arith.constant 0 : index
    %17 = vector.load %arg7[%c0_10, %c0_11, %c0_12] : memref<1x16x64xf32, #tpu.memory_space<vmem>>, vector<1x16x64xf32>
    %18 = vector.shape_cast %17 : vector<1x16x64xf32> to vector<16x64xf32>
    %19 = vector.shape_cast %16 : vector<16x64xf32> to vector<1x16x64xf32>
    tpu.vector_store %arg7[%c0_10, %c0_11, %c0_12], %19 {strides = array<i32>} : memref<1x16x64xf32, #tpu.memory_space<vmem>>, vector<1x16x64xf32>,
    return
  }
  func.func @transform_0(%arg0: i32, %arg1: i32) -> (i32, i32, i32) {
    %c0_i32 = arith.constant 0 : i32
    %c0_i32_0 = arith.constant 0 : i32
    return %arg0, %c0_i32, %arg1 : i32, i32, i32
  }
  func.func @transform_1(%arg0: i32, %arg1: i32) -> (i32, i32, i32) {
    %c0_i32 = arith.constant 0 : i32
    %c0_i32_0 = arith.constant 0 : i32
    return %arg0, %c0_i32, %arg1 : i32, i32, i32
  }
  func.func @transform_2(%arg0: i32, %arg1: i32) -> (i32, i32) {
    %c0_i32 = arith.constant 0 : i32
    %c0_i32_0 = arith.constant 0 : i32
    %c0_i32_1 = arith.constant 0 : i32
    return %c0_i32, %c0_i32_0 : i32, i32
  }
  func.func @transform_3(%arg0: i32, %arg1: i32) -> (i32, i32) {
    %c0_i32 = arith.constant 0 : i32
    %c0_i32_0 = arith.constant 0 : i32
    %c0_i32_1 = arith.constant 0 : i32
    return %c0_i32, %c0_i32_0 : i32, i32
  }
  func.func @transform_4(%arg0: i32, %arg1: i32) -> i32 {
    %c0_i32 = arith.constant 0 : i32
    %c0_i32_0 = arith.constant 0 : i32
    return %c0_i32 : i32
  }
  func.func @transform_5(%arg0: i32, %arg1: i32) -> (i32, i32, i32) {
    %c0_i32 = arith.constant 0 : i32
    %c0_i32_0 = arith.constant 0 : i32
    return %arg0, %c0_i32, %arg1 : i32, i32, i32
  }
}

</mosaic_0001>

<llo_original>
// kernel: initial_block.2
$region0: #{initial_block.2}
  #allocation0 [shape = 'u32[]', space=smem, size = 0x4, offset = 0x4, fixed_abs, tag = 'smem constant byte address 0x4 - core index']
  #allocation1 [shape = 'u32[144,128]{1,0:T(1,128)}', space=vmem, size = 0x12000, scoped, tag = 'internal scratch']
  %s0 = inlined_call_operand.vmem [shape: f32[2,27,64], index: 0, kind: input, shape index: {}]
  %s1 = inlined_call_operand.vmem [shape: f32[13,27], index: 1, kind: input, shape index: {}]
  %s2 = inlined_call_operand.vmem [shape: f32[2,13,64], index: 2, kind: output, shape index: {0}]
  %s3 = inlined_call_operand.vmem [shape: f32[2,3,64], index: 3, kind: output, shape index: {1}]
  %s4 = inlined_call_operand.vmem [shape: f32[2,13,1], index: 4, kind: output, shape index: {2}]
  %s5 = inlined_call_operand.vmem [shape: f32[2,13,1], index: 5, kind: output, shape index: {3}]
  %6 = xla_tuple %s2, %s3, %s4, %s5
  %s7 = sld [smem:[#allocation0]]
  $region65: #{initial_block.2} parent=0
    _
  %s9 = ssub.s32 1, %s7
  %s10 = scalar_select 0, %s9, %s7
  loop: start=0, step=1, limit=4
  $region2: #{initial_block.2} parent=0 // loop_pre_header
    _
  $region3: #{initial_block.2} parent=0 // loop_header
    %s12 = sphi 0, %s16
    %p13 = scmp.ge.s32.totalorder %s12, 4
    %s19 = sphi 0, %s31
    %s20 = sphi 0, %s27
    %s21 = sphi 0, %s19
    %s22 = sphi 0, %s20
    %s23 = sphi 0, %s21
    %s24 = sphi 0, %s22
    %s36 = sphi 0, %s38
    %s39 = sphi 0, %s36
    %s40 = sphi 0, %s39
    %s56 = sphi 0, %s40
    %s60 = sphi 0, %s60
    %s62 = sphi 0, %s60
    %s63 = sphi 0, %s62
    %s77 = sphi 0, %s63
    %s85 = sphi 0, %s87
    %s88 = sphi 0, %s85
    %s89 = sphi 0, %s88
    %s105 = sphi 0, %s89
    %s113 = sphi 0, %s115
    %s116 = sphi 0, %s113
    %s117 = sphi 0, %s116
    %s133 = sphi 0, %s117
    %s141 = sphi 0, %s143
    %s144 = sphi 0, %s141
    %s145 = sphi 0, %s144
    %s161 = sphi 0, %s145
    %s169 = sphi 0, %s171
    %s172 = sphi 0, %s169
    %s173 = sphi 0, %s172
    %s189 = sphi 0, %s173
  $region4: #{initial_block.2} parent=0 // loop_header_branch
    %15 = sbr.rel (%p13) target = $region8
  $region5: #{initial_block.2} parent=0 // loop_body
    %s17 = ssub.s32 %s12, 1
    %s18 = ssub.s32 %s12, 2
    %s25 = sadd.s32 1, %s20
    %p26 = scmp.ge.s32.totalorder %s25, 1
    %s27 = scalar_select %p26, 0, %s25
    %s28 = sadd.s32 1, %s19
    %s29 = scalar_select %p26, %s28, %s19
    %p30 = scmp.ge.s32.totalorder %s29, 2
    %s31 = scalar_select %p30, 0, %s29
    %s32 = ssub.s32 %s19, %s31
    %s33 = ssub.s32 %s20, %s27
    %s34 = sor.u32 %s32, %s33
    %p35 = scmp.eq.s32.totalorder %s34, 0
    %s37 = sadd.s32 %s36, 1
    %s38 = scalar_select %p35, %s36, %s37
    %p41 = pneg %p35
    %p42 = scmp.eq.s32.totalorder %s12, 1
    %p43 = por %p41, %p42
    %p44 = scmp.ne.s32.totalorder %s36, %s39
    %p45 = scmp.eq.s32.totalorder %s12, 0
    %p46 = por %p44, %p45
    %p47 = scmp.ne.s32.totalorder %s36, %s39
    %p48 = scmp.eq.s32.totalorder %s17, 1
    %p49 = por %p47, %p48
    %p50 = scmp.ne.s32.totalorder %s39, %s40
    %p51 = scmp.eq.s32.totalorder %s17, 0
    %p52 = por %p50, %p51
    %p53 = scmp.ne.s32.totalorder %s39, %s40
    %p54 = scmp.eq.s32.totalorder %s18, 1
    %p55 = por %p53, %p54
    %p57 = scmp.ne.s32.totalorder %s40, %s56
    %p58 = scmp.eq.s32.totalorder %s18, 0
    %p59 = por %p57, %p58
    %s61 = sadd.s32 %s60, 1
    %p64 = scmp.eq.s32.totalorder %s12, 1
    %p65 = scmp.ne.s32.totalorder %s60, %s62
    %p66 = scmp.eq.s32.totalorder %s12, 0
    %p67 = por %p65, %p66
    %p68 = scmp.ne.s32.totalorder %s60, %s62
    %p69 = scmp.eq.s32.totalorder %s17, 1
    %p70 = por %p68, %p69
    %p71 = scmp.ne.s32.totalorder %s62, %s63
    %p72 = scmp.eq.s32.totalorder %s17, 0
    %p73 = por %p71, %p72
    %p74 = scmp.ne.s32.totalorder %s62, %s63
    %p75 = scmp.eq.s32.totalorder %s18, 1
    %p76 = por %p74, %p75
    %p78 = scmp.ne.s32.totalorder %s63, %s77
    %p79 = scmp.eq.s32.totalorder %s18, 0
    %p80 = por %p78, %p79
    %s81 = ssub.s32 %s19, %s31
    %s82 = ssub.s32 %s20, %s27
    %s83 = sor.u32 %s81, %s82
    %p84 = scmp.eq.s32.totalorder %s83, 0
    %s86 = sadd.s32 %s85, 1
    %s87 = scalar_select %p84, %s85, %s86
    %p90 = pneg %p84
    %p91 = scmp.eq.s32.totalorder %s12, 1
    %p92 = por %p90, %p91
    %p93 = scmp.ne.s32.totalorder %s85, %s88
    %p94 = scmp.eq.s32.totalorder %s12, 0
    %p95 = por %p93, %p94
    %p96 = scmp.ne.s32.totalorder %s85, %s88
    %p97 = scmp.eq.s32.totalorder %s17, 1
    %p98 = por %p96, %p97
    %p99 = scmp.ne.s32.totalorder %s88, %s89
    %p100 = scmp.eq.s32.totalorder %s17, 0
    %p101 = por %p99, %p100
    %p102 = scmp.ne.s32.totalorder %s88, %s89
    %p103 = scmp.eq.s32.totalorder %s18, 1
    %p104 = por %p102, %p103
    %p106 = scmp.ne.s32.totalorder %s89, %s105
    %p107 = scmp.eq.s32.totalorder %s18, 0
    %p108 = por %p106, %p107
    %s109 = ssub.s32 %s19, %s31
    %s110 = ssub.s32 %s20, %s27
    %s111 = sor.u32 %s109, %s110
    %p112 = scmp.eq.s32.totalorder %s111, 0
    %s114 = sadd.s32 %s113, 1
    %s115 = scalar_select %p112, %s113, %s114
    %p118 = pneg %p112
    %p119 = scmp.eq.s32.totalorder %s12, 1
    %p120 = por %p118, %p119
    %p121 = scmp.ne.s32.totalorder %s113, %s116
    %p122 = scmp.eq.s32.totalorder %s12, 0
    %p123 = por %p121, %p122
    %p124 = scmp.ne.s32.totalorder %s113, %s116
    %p125 = scmp.eq.s32.totalorder %s17, 1
    %p126 = por %p124, %p125
    %p127 = scmp.ne.s32.totalorder %s116, %s117
    %p128 = scmp.eq.s32.totalorder %s17, 0
    %p129 = por %p127, %p128
    %p130 = scmp.ne.s32.totalorder %s116, %s117
    %p131 = scmp.eq.s32.totalorder %s18, 1
    %p132 = por %p130, %p131
    %p134 = scmp.ne.s32.totalorder %s117, %s133
    %p135 = scmp.eq.s32.totalorder %s18, 0
    %p136 = por %p134, %p135
    %s137 = sadd.s32 %s19, %s20
    %s138 = sadd.s32 %s31, %s27
    %s139 = ssub.s32 %s137, %s138
    %p140 = scmp.eq.s32.totalorder %s139, 0
    %s142 = sadd.s32 %s141, 1
    %s143 = scalar_select %p140, %s141, %s142
    %p146 = pneg %p140
    %p147 = scmp.eq.s32.totalorder %s12, 1
    %p148 = por %p146, %p147
    %p149 = scmp.ne.s32.totalorder %s141, %s144
    %p150 = scmp.eq.s32.totalorder %s12, 0
    %p151 = por %p149, %p150
    %p152 = scmp.ne.s32.totalorder %s141, %s144
    %p153 = scmp.eq.s32.totalorder %s17, 1
    %p154 = por %p152, %p153
    %p155 = scmp.ne.s32.totalorder %s144, %s145
    %p156 = scmp.eq.s32.totalorder %s17, 0
    %p157 = por %p155, %p156
    %p158 = scmp.ne.s32.totalorder %s144, %s145
    %p159 = scmp.eq.s32.totalorder %s18, 1
    %p160 = por %p158, %p159
    %p162 = scmp.ne.s32.totalorder %s145, %s161
    %p163 = scmp.eq.s32.totalorder %s18, 0
    %p164 = por %p162, %p163
    %s165 = sadd.s32 %s19, %s20
    %s166 = sadd.s32 %s31, %s27
    %s167 = ssub.s32 %s165, %s166
    %p168 = scmp.eq.s32.totalorder %s167, 0
    %s170 = sadd.s32 %s169, 1
    %s171 = scalar_select %p168, %s169, %s170
    %p174 = pneg %p168
    %p175 = scmp.eq.s32.totalorder %s12, 1
    %p176 = por %p174, %p175
    %p177 = scmp.ne.s32.totalorder %s169, %s172
    %p178 = scmp.eq.s32.totalorder %s12, 0
    %p179 = por %p177, %p178
    %p180 = scmp.ne.s32.totalorder %s169, %s172
    %p181 = scmp.eq.s32.totalorder %s17, 1
    %p182 = por %p180, %p181
    %p183 = scmp.ne.s32.totalorder %s172, %s173
    %p184 = scmp.eq.s32.totalorder %s17, 0
    %p185 = por %p183, %p184
    %p186 = scmp.ne.s32.totalorder %s172, %s173
    %p187 = scmp.eq.s32.totalorder %s18, 1
    %p188 = por %p186, %p187
    %p190 = scmp.ne.s32.totalorder %s173, %s189
    %p191 = scmp.eq.s32.totalorder %s18, 0
    %p192 = por %p190, %p191
    %p193 = scmp.le.s32.totalorder 1, %s12
    %p194 = scmp.lt.s32.totalorder %s12, 3
    %p195 = pnand %p193, %p194
    %p196 = pneg %p195
    // Predicated region
    $region9: #{initial_block.2} parent=5 // pred_check
      _
    $region10: #{initial_block.2} parent=5 // pred_check_branch
      %198 = sbr.rel (%p195) target = $region12
    $region11: #{initial_block.2} parent=5 // pred_region
      %s199 = ssub.s32 %s12, 1
      // Predicated region
      $region13: #{initial_block.2} parent=11 // pred_check
        %p200 = pneg %p73
      $region14: #{initial_block.2} parent=11 // pred_check_branch
        %202 = sbr.rel (%p200) target = $region16
      $region15: #{initial_block.2} parent=11 // pred_region
        _
      $region16: #{initial_block.2} parent=11 // pred_fallthru
        _
    $region12: #{initial_block.2} parent=5 // pred_fallthru
      _
    %p203 = scmp.lt.s32.totalorder %s12, 2
    // Predicated region
    $region17: #{initial_block.2} parent=5 // pred_check
      %p204 = pneg %p203
    $region18: #{initial_block.2} parent=5 // pred_check_branch
      %206 = sbr.rel (%p204) target = $region20
    $region19: #{initial_block.2} parent=5 // pred_region
      // Predicated region
      $region21: #{initial_block.2} parent=19 // pred_check
        %p207 = pneg %p46
      $region22: #{initial_block.2} parent=19 // pred_check_branch
        %209 = sbr.rel (%p207) target = $region24
      $region23: #{initial_block.2} parent=19 // pred_region
        %p210 = scmp.lt.s32.totalorder %s19, 1
        %s211 = scalar_select %p210, %s19, 1
        %p212 = scmp.lt.s32.totalorder %s20, 0
        %s213 = scalar_select %p212, %s20, 0
        %s214 = smul.addr %s211, 4
        %s215 = sadd.s32 %s213, %s214
        %s216 = smul.addr %s215, 8
        %s217 = scalar_lea.vmem %s0, %s216
      $region24: #{initial_block.2} parent=19 // pred_fallthru
        _
    $region20: #{initial_block.2} parent=5 // pred_fallthru
      _
    %p218 = scmp.le.s32.totalorder 1, %s12
    %p219 = scmp.lt.s32.totalorder %s12, 3
    %p220 = pnand %p218, %p219
    %p221 = pneg %p220
    // Predicated region
    $region25: #{initial_block.2} parent=5 // pred_check
      _
    $region26: #{initial_block.2} parent=5 // pred_check_branch
      %223 = sbr.rel (%p220) target = $region28
    $region27: #{initial_block.2} parent=5 // pred_region
      %s224 = ssub.s32 %s12, 1
      %p225 = scmp.lt.s32.totalorder %s21, 1
      %s226 = scalar_select %p225, %s21, 1
      %p227 = scmp.lt.s32.totalorder %s22, 0
      %s228 = scalar_select %p227, %s22, 0
      %s229 = smul.addr %s226, 4
      %s230 = sadd.s32 %s228, %s229
      %s231 = smul.addr %s230, 8
      %s232 = scalar_lea.vmem %s0, %s231
      %p233 = pneg %p52
      %p234 = pneg %p49
      %p235 = pneg %p73
      %p236 = pneg %p70
      %p237 = pneg %p101
      %p238 = pneg %p98
      %p239 = scmp.lt.s32.totalorder %s21, 1
      %s240 = scalar_select %p239, %s21, 1
      %p241 = scmp.lt.s32.totalorder %s22, 0
      %s242 = scalar_select %p241, %s22, 0
      %s243 = smul.addr %s240, 2
      %s244 = sadd.s32 %s242, %s243
      %s245 = smul.addr %s244, 8
      %s246 = scalar_lea.vmem %s2, %s245
      %p247 = pneg %p129
      %p248 = pneg %p126
      %p249 = scmp.lt.s32.totalorder %s21, 1
      %s250 = scalar_select %p249, %s21, 1
      %p251 = scmp.lt.s32.totalorder %s22, 0
      %s252 = scalar_select %p251, %s22, 0
      %s253 = sadd.s32 %s252, %s250
      %s254 = smul.addr %s253, 4
      %s255 = scalar_lea.vmem %s3, %s254
      %p256 = pneg %p157
      %p257 = pneg %p154
      %s258 = sadd.s32 %s21, %s22
      %p259 = scmp.lt.s32.totalorder %s258, 1
      %s260 = scalar_select %p259, %s258, 1
      %s261 = smul.addr %s260, 2
      %s262 = smul.addr %s261, 8
      %s263 = scalar_lea.vmem %s4, %s262
      %p264 = pneg %p185
      %p265 = pneg %p182
      %s266 = sadd.s32 %s21, %s22
      %p267 = scmp.lt.s32.totalorder %s266, 1
      %s268 = scalar_select %p267, %s266, 1
      %s269 = smul.addr %s268, 2
      %s270 = smul.addr %s269, 8
      %s271 = scalar_lea.vmem %s5, %s270
      %p272 = scmp.lt.s32.totalorder %s21, 1
      %s273 = scalar_select %p272, %s21, 1
      %p274 = scmp.lt.s32.totalorder %s22, 0
      %s275 = scalar_select %p274, %s22, 0
      %s276 = smul.addr %s273, 4
      %s277 = sadd.s32 %s275, %s276
      %s278 = smul.addr %s277, 8
      %s279 = scalar_lea.vmem %s0, %s278
      %p280 = scmp.lt.s32.totalorder %s21, 1
      %s281 = scalar_select %p280, %s21, 1
      %p282 = scmp.lt.s32.totalorder %s22, 0
      %s283 = scalar_select %p282, %s22, 0
      %s284 = smul.addr %s281, 2
      %s285 = sadd.s32 %s283, %s284
      %s286 = smul.addr %s285, 8
      %s287 = scalar_lea.vmem %s2, %s286
      %p288 = scmp.lt.s32.totalorder %s21, 1
      %s289 = scalar_select %p288, %s21, 1
      %p290 = scmp.lt.s32.totalorder %s22, 0
      %s291 = scalar_select %p290, %s22, 0
      %s292 = sadd.s32 %s291, %s289
      %s293 = smul.addr %s292, 4
      %s294 = scalar_lea.vmem %s3, %s293
      %s295 = sadd.s32 %s21, %s22
      %p296 = scmp.lt.s32.totalorder %s295, 1
      %s297 = scalar_select %p296, %s295, 1
      %s298 = smul.addr %s297, 2
      %s299 = smul.addr %s298, 8
      %s300 = scalar_lea.vmem %s4, %s299
      %s301 = sadd.s32 %s21, %s22
      %s302 = sadd.s32 %s21, %s22
      %p303 = scmp.lt.s32.totalorder %s302, 1
      %s304 = scalar_select %p303, %s302, 1
      %s305 = smul.addr %s304, 2
      %s306 = smul.addr %s305, 8
      %s307 = scalar_lea.vmem %s5, %s306
      %s308 = sadd.s32 %s21, %s22
      %v309 = vld [vmem:[%s1] sm:$0xff]
      %v310 = vld [vmem:[%s1 + $0x8] sm:$0x1f]
      %v311 = vld [vmem:[%s279] sm:$0xff]
      %v312 = vld [vmem:[%s279 + $0x8] sm:$0xff]
      %v313 = vld [vmem:[%s279 + $0x10] sm:$0xff]
      %v314 = vld [vmem:[%s279 + $0x18] sm:$0x7]
      %vm315 = vcmask 220160
      %v317 = vsel %vm315, %v309, 0
      %v320 = vsel %vm315, %v310, 0
      %vm322 = vcmask 1042432
      %v324 = vsel %vm322, %v314, 0
      %326 = vmatprep.subr.mxu0 0.0
      %327 = vmatpush1.msra.mxu0 %v311
      %328 = vmatprep.subr.mxu0 0.0
      %329 = vmatpush1.msra.mxu0 %v312
      %330 = vmatprep.subr.mxu0 0.0
      %331 = vmatpush1.msra.mxu0 %v313
      %332 = vmatprep.subr.mxu0 0.0
      %333 = vmatpush1.msra.mxu0 %v324
      %334 = vmatprep.subr.mxu0 0.0
      %335 = vmatpush1.msra.mxu0 0.0
      %336 = vmatprep.subr.mxu0 0.0
      %337 = vmatpush1.msra.mxu0 0.0
      %338 = vmatprep.subr.mxu0 0.0
      %339 = vmatpush1.msra.mxu0 0.0
      %340 = vmatprep.subr.mxu0 0.0
      %341 = vmatpush1.msra.mxu0 0.0
      %342 = vmatprep.subr.mxu0 0.0
      %343 = vmatpush1.msra.mxu0 0.0
      %344 = vmatprep.subr.mxu0 0.0
      %345 = vmatpush1.msra.mxu0 0.0
      %346 = vmatprep.subr.mxu0 0.0
      %347 = vmatpush1.msra.mxu0 0.0
      %348 = vmatprep.subr.mxu0 0.0
      %349 = vmatpush1.msra.mxu0 0.0
      %350 = vmatprep.subr.mxu0 0.0
      %351 = vmatpush1.msra.mxu0 0.0
      %352 = vmatprep.subr.mxu0 0.0
      %353 = vmatpush1.msra.mxu0 0.0
      %354 = vmatprep.subr.mxu0 0.0
      %355 = vmatpush1.msra.mxu0 0.0
      %356 = vmatprep.subr.mxu0 0.0
      %357 = vmatpush1.msra.mxu0 0.0
      %358 = vmatprep.subr.mxu0 0.0
      %359 = vmatpush1.msra.mxu0 0.0
      %360 = vmatprep.subr.mxu0 0.0
      %361 = vmatpush1.msra.mxu0 0.0
      %362 = vmatprep.subr.mxu0 0.0
      %363 = vmatpush1.msra.mxu0 0.0
      %364 = vmatprep.subr.mxu0 0.0
      %365 = vmatpush1.msra.mxu0 0.0
      %366 = vmatprep.subr.mxu0 0.0
      %367 = vmatpush1.msra.mxu0 0.0
      %368 = vmatprep.subr.mxu0 0.0
      %369 = vmatpush1.msra.mxu0 0.0
      %370 = vmatprep.subr.mxu0 0.0
      %371 = vmatpush1.msra.mxu0 0.0
      %372 = vmatprep.subr.mxu0 0.0
      %373 = vmatpush1.msra.mxu0 0.0
      %374 = vmatprep.subr.mxu0 0.0
      %375 = vmatpush1.msra.mxu0 0.0
      %376 = vmatprep.subr.mxu0 0.0
      %377 = vmatpush1.msra.mxu0 0.0
      %378 = vmatprep.subr.mxu0 0.0
      %379 = vmatpush1.msra.mxu0 0.0
      %380 = vmatprep.subr.mxu0 0.0
      %381 = vmatpush1.msra.mxu0 0.0
      %382 = vmatprep.subr.mxu0 0.0
      %383 = vmatpush1.msra.mxu0 0.0
      %384 = vmatprep.subr.mxu0 0.0
      %385 = vmatpush1.msra.mxu0 0.0
      %386 = vmatprep.subr.mxu0 0.0
      %387 = vmatpush1.msra.mxu0 0.0
      %388 = vmatprep.subr.mxu0 0.0
      %389 = vmatpush1.msra.mxu0 0.0
      %390 = vmatprep.mubr.f32.mxu0 0.0
      %391 = vmatmul.mubr.f32.gmra.mrb[0].mxu0 %v317
      %v392 = vpop.f32.mrb[0].mxu0
      %v393 = vadd.f32 0.0, %v392
      %v394 = vpop.f32.mrb[0].mxu0
      %395 = vmatprep.mubr.f32.mxu0 0.0
      %396 = vmatmul.mubr.f32.gmra.mrb[0].mxu0 %v320
      %v397 = vpop.f32.mrb[0].mxu0
      %v398 = vadd.f32 0.0, %v397
      %v399 = vpop.f32.mrb[0].mxu0
      %400 = vdwg.mxu0
      %vm401 = vcmask 523264
      %402 = vst.msk [vmem:[%s287] sm:$0xff] %vm401, %v393
      %vm403 = vcmask 520192
      %404 = vst.msk [vmem:[%s287 + $0x8] sm:$0x1f] %vm403, %v398
      %v405 = vld [vmem:[%s279] sm:$0x7]
      %v406 = vld [vmem:[%s279 + $0x3] sm:$0x7]
      %v407 = vmax.f32 %v405, %v406
      %v408 = vld [vmem:[%s279 + $0x6] sm:$0x7]
      %v409 = vld [vmem:[%s279 + $0x9] sm:$0x7]
      %v410 = vmax.f32 %v408, %v409
      %v411 = vmax.f32 %v407, %v410
      %vm412 = vcmask 518144
      %413 = vst.msk [vmem:[%s294] sm:$0x7] %vm412, %v411
      %v414 = vsel %vm401, %v393, 0.0
      %415 = vadd.xlane.f32.xlu0 %v414
      %v416 = vpop.xlane.xlu0 %415
      %v417 = vsel %vm403, %v398, 0.0
      %418 = vadd.xlane.f32.xlu0 %v417
      %v419 = vpop.xlane.xlu0 %418
      %vm420 = vcmask 7168
      %421 = vst.msk [vmem:[%s300] sm:$0xff] %vm420, %v416
      %vm422 = vcmask 4096
      %423 = vst.msk [vmem:[%s300 + $0x8] sm:$0x1f] %vm422, %v419
      %v424 = vmul.f32 %v393, %v393
      %v425 = vmul.f32 %v398, %v398
      %v426 = vsel %vm401, %v424, 0.0
      %427 = vadd.xlane.f32.xlu0 %v426
      %v428 = vpop.xlane.xlu0 %427
      %v429 = vsel %vm403, %v425, 0.0
      %430 = vadd.xlane.f32.xlu0 %v429
      %v431 = vpop.xlane.xlu0 %430
      %432 = vst.msk [vmem:[%s307] sm:$0xff] %vm420, %v428
      %433 = vst.msk [vmem:[%s307 + $0x8] sm:$0x1f] %vm422, %v431
      %p434 = scmp.lt.s32.totalorder %s21, 1
      %s435 = scalar_select %p434, %s21, 1
      %p436 = scmp.lt.s32.totalorder %s22, 0
      %s437 = scalar_select %p436, %s22, 0
      %s438 = smul.addr %s435, 2
      %s439 = sadd.s32 %s437, %s438
      %s440 = smul.addr %s439, 8
      %s441 = scalar_lea.vmem %s2, %s440
      %p442 = scmp.lt.s32.totalorder %s21, 1
      %s443 = scalar_select %p442, %s21, 1
      %p444 = scmp.lt.s32.totalorder %s22, 0
      %s445 = scalar_select %p444, %s22, 0
      %s446 = sadd.s32 %s445, %s443
      %s447 = smul.addr %s446, 4
      %s448 = scalar_lea.vmem %s3, %s447
      %s449 = sadd.s32 %s21, %s22
      %p450 = scmp.lt.s32.totalorder %s449, 1
      %s451 = scalar_select %p450, %s449, 1
      %s452 = smul.addr %s451, 2
      %s453 = smul.addr %s452, 8
      %s454 = scalar_lea.vmem %s4, %s453
      %s455 = sadd.s32 %s21, %s22
      %p456 = scmp.lt.s32.totalorder %s455, 1
      %s457 = scalar_select %p456, %s455, 1
      %s458 = smul.addr %s457, 2
      %s459 = smul.addr %s458, 8
      %s460 = scalar_lea.vmem %s5, %s459
      // Predicated region
      $region29: #{initial_block.2} parent=27 // pred_check
        %p461 = pneg %p98
      $region30: #{initial_block.2} parent=27 // pred_check_branch
        %463 = sbr.rel (%p461) target = $region32
      $region31: #{initial_block.2} parent=27 // pred_region
        _
      $region32: #{initial_block.2} parent=27 // pred_fallthru
        _
      // Predicated region
      $region33: #{initial_block.2} parent=27 // pred_check
        %p464 = pneg %p126
      $region34: #{initial_block.2} parent=27 // pred_check_branch
        %466 = sbr.rel (%p464) target = $region36
      $region35: #{initial_block.2} parent=27 // pred_region
        _
      $region36: #{initial_block.2} parent=27 // pred_fallthru
        _
      // Predicated region
      $region37: #{initial_block.2} parent=27 // pred_check
        %p467 = pneg %p154
      $region38: #{initial_block.2} parent=27 // pred_check_branch
        %469 = sbr.rel (%p467) target = $region40
      $region39: #{initial_block.2} parent=27 // pred_region
        %s470 = sadd.s32 %s21, %s22
      $region40: #{initial_block.2} parent=27 // pred_fallthru
        _
      // Predicated region
      $region41: #{initial_block.2} parent=27 // pred_check
        %p471 = pneg %p182
      $region42: #{initial_block.2} parent=27 // pred_check_branch
        %473 = sbr.rel (%p471) target = $region44
      $region43: #{initial_block.2} parent=27 // pred_region
        %s474 = sadd.s32 %s21, %s22
      $region44: #{initial_block.2} parent=27 // pred_fallthru
        _
    $region28: #{initial_block.2} parent=5 // pred_fallthru
      _
    %p475 = scmp.le.s32.totalorder 2, %s12
    // Predicated region
    $region45: #{initial_block.2} parent=5 // pred_check
      %p476 = pneg %p475
    $region46: #{initial_block.2} parent=5 // pred_check_branch
      %478 = sbr.rel (%p476) target = $region48
    $region47: #{initial_block.2} parent=5 // pred_region
      %s479 = ssub.s32 %s12, 2
      // Predicated region
      $region49: #{initial_block.2} parent=47 // pred_check
        %p480 = pneg %p104
      $region50: #{initial_block.2} parent=47 // pred_check_branch
        %482 = sbr.rel (%p480) target = $region52
      $region51: #{initial_block.2} parent=47 // pred_region
        %p483 = scmp.lt.s32.totalorder %s23, 1
        %s484 = scalar_select %p483, %s23, 1
        %p485 = scmp.lt.s32.totalorder %s24, 0
        %s486 = scalar_select %p485, %s24, 0
        %s487 = smul.addr %s484, 2
        %s488 = sadd.s32 %s486, %s487
        %s489 = smul.addr %s488, 8
        %s490 = scalar_lea.vmem %s2, %s489
      $region52: #{initial_block.2} parent=47 // pred_fallthru
        _
      // Predicated region
      $region53: #{initial_block.2} parent=47 // pred_check
        %p491 = pneg %p132
      $region54: #{initial_block.2} parent=47 // pred_check_branch
        %493 = sbr.rel (%p491) target = $region56
      $region55: #{initial_block.2} parent=47 // pred_region
        %p494 = scmp.lt.s32.totalorder %s23, 1
        %s495 = scalar_select %p494, %s23, 1
        %p496 = scmp.lt.s32.totalorder %s24, 0
        %s497 = scalar_select %p496, %s24, 0
        %s498 = sadd.s32 %s497, %s495
        %s499 = smul.addr %s498, 4
        %s500 = scalar_lea.vmem %s3, %s499
      $region56: #{initial_block.2} parent=47 // pred_fallthru
        _
      // Predicated region
      $region57: #{initial_block.2} parent=47 // pred_check
        %p501 = pneg %p160
      $region58: #{initial_block.2} parent=47 // pred_check_branch
        %503 = sbr.rel (%p501) target = $region60
      $region59: #{initial_block.2} parent=47 // pred_region
        %s504 = sadd.s32 %s23, %s24
        %p505 = scmp.lt.s32.totalorder %s504, 1
        %s506 = scalar_select %p505, %s504, 1
        %s507 = smul.addr %s506, 2
        %s508 = smul.addr %s507, 8
        %s509 = scalar_lea.vmem %s4, %s508
      $region60: #{initial_block.2} parent=47 // pred_fallthru
        _
      // Predicated region
      $region61: #{initial_block.2} parent=47 // pred_check
        %p510 = pneg %p188
      $region62: #{initial_block.2} parent=47 // pred_check_branch
        %512 = sbr.rel (%p510) target = $region64
      $region63: #{initial_block.2} parent=47 // pred_region
        %s513 = sadd.s32 %s23, %s24
        %p514 = scmp.lt.s32.totalorder %s513, 1
        %s515 = scalar_select %p514, %s513, 1
        %s516 = smul.addr %s515, 2
        %s517 = smul.addr %s516, 8
        %s518 = scalar_lea.vmem %s5, %s517
      $region64: #{initial_block.2} parent=47 // pred_fallthru
        _
    $region48: #{initial_block.2} parent=5 // pred_fallthru
      _
  $region6: #{initial_block.2} parent=0 // loop_footer
    %s16 = sadd.s32 1, %s12
  $region7: #{initial_block.2} parent=0 // loop_footer_branch
    %11 = sbr.rel target = $region3
  $region8: #{initial_block.2} parent=0 // loop_exit
    _

// kernel: initial_block.3
$region0: #{initial_block.3}
  #allocation0 [shape = 'u32[]', space=smem, size = 0x4, offset = 0x4, fixed_abs, tag = 'smem constant byte address 0x4 - core index']
  #allocation1 [shape = 'u32[144,128]{1,0:T(1,128)}', space=vmem, size = 0x12000, scoped, tag = 'internal scratch']
  #allocation2 [shape = 'f32[1]{0:T(128)S(6)}', space=smem, size = 0x200, scoped, tag = 'scoped memory for initial_block.3']
  %s0 = inlined_call_operand.vmem [shape: f32[2,13,64], index: 0, kind: input, shape index: {}]
  %s1 = inlined_call_operand.vmem [shape: f32[2,3,64], index: 1, kind: input, shape index: {}]
  %s2 = inlined_call_operand.vmem [shape: f32[13,1], index: 2, kind: input, shape index: {}]
  %s3 = inlined_call_operand.vmem [shape: f32[13,1], index: 3, kind: input, shape index: {}]
  %s4 = inlined_call_operand.<no memory space> [shape: f32[1], index: 4, kind: input, shape index: {}]
  %s5 = inlined_call_operand.vmem [shape: f32[2,16,64], index: 5, kind: output, shape index: {}]
  %s6 = sld [smem:[#allocation0]]
  $region53: #{initial_block.3} parent=0
    _
  %s8 = ssub.s32 1, %s6
  %s9 = scalar_select 0, %s8, %s6
  %10 = sst [smem:[#allocation2]] %s4
  loop: start=0, step=1, limit=4
  $region2: #{initial_block.3} parent=0 // loop_pre_header
    _
  $region3: #{initial_block.3} parent=0 // loop_header
    %s12 = sphi 0, %s16
    %p13 = scmp.ge.s32.totalorder %s12, 4
    %s19 = sphi 0, %s31
    %s20 = sphi 0, %s27
    %s21 = sphi 0, %s19
    %s22 = sphi 0, %s20
    %s23 = sphi 0, %s21
    %s24 = sphi 0, %s22
    %s36 = sphi 0, %s38
    %s39 = sphi 0, %s36
    %s40 = sphi 0, %s39
    %s56 = sphi 0, %s40
    %s64 = sphi 0, %s66
    %s67 = sphi 0, %s64
    %s68 = sphi 0, %s67
    %s84 = sphi 0, %s68
    %s88 = sphi 0, %s88
    %s90 = sphi 0, %s88
    %s91 = sphi 0, %s90
    %s105 = sphi 0, %s91
    %s109 = sphi 0, %s109
    %s111 = sphi 0, %s109
    %s112 = sphi 0, %s111
    %s126 = sphi 0, %s112
    %s130 = sphi 0, %s130
    %s132 = sphi 0, %s130
    %s133 = sphi 0, %s132
    %s147 = sphi 0, %s133
    %s155 = sphi 0, %s157
    %s158 = sphi 0, %s155
    %s159 = sphi 0, %s158
    %s175 = sphi 0, %s159
  $region4: #{initial_block.3} parent=0 // loop_header_branch
    %15 = sbr.rel (%p13) target = $region8
  $region5: #{initial_block.3} parent=0 // loop_body
    %s17 = ssub.s32 %s12, 1
    %s18 = ssub.s32 %s12, 2
    %s25 = sadd.s32 1, %s20
    %p26 = scmp.ge.s32.totalorder %s25, 1
    %s27 = scalar_select %p26, 0, %s25
    %s28 = sadd.s32 1, %s19
    %s29 = scalar_select %p26, %s28, %s19
    %p30 = scmp.ge.s32.totalorder %s29, 2
    %s31 = scalar_select %p30, 0, %s29
    %s32 = ssub.s32 %s19, %s31
    %s33 = ssub.s32 %s20, %s27
    %s34 = sor.u32 %s32, %s33
    %p35 = scmp.eq.s32.totalorder %s34, 0
    %s37 = sadd.s32 %s36, 1
    %s38 = scalar_select %p35, %s36, %s37
    %p41 = pneg %p35
    %p42 = scmp.eq.s32.totalorder %s12, 1
    %p43 = por %p41, %p42
    %p44 = scmp.ne.s32.totalorder %s36, %s39
    %p45 = scmp.eq.s32.totalorder %s12, 0
    %p46 = por %p44, %p45
    %p47 = scmp.ne.s32.totalorder %s36, %s39
    %p48 = scmp.eq.s32.totalorder %s17, 1
    %p49 = por %p47, %p48
    %p50 = scmp.ne.s32.totalorder %s39, %s40
    %p51 = scmp.eq.s32.totalorder %s17, 0
    %p52 = por %p50, %p51
    %p53 = scmp.ne.s32.totalorder %s39, %s40
    %p54 = scmp.eq.s32.totalorder %s18, 1
    %p55 = por %p53, %p54
    %p57 = scmp.ne.s32.totalorder %s40, %s56
    %p58 = scmp.eq.s32.totalorder %s18, 0
    %p59 = por %p57, %p58
    %s60 = ssub.s32 %s19, %s31
    %s61 = ssub.s32 %s20, %s27
    %s62 = sor.u32 %s60, %s61
    %p63 = scmp.eq.s32.totalorder %s62, 0
    %s65 = sadd.s32 %s64, 1
    %s66 = scalar_select %p63, %s64, %s65
    %p69 = pneg %p63
    %p70 = scmp.eq.s32.totalorder %s12, 1
    %p71 = por %p69, %p70
    %p72 = scmp.ne.s32.totalorder %s64, %s67
    %p73 = scmp.eq.s32.totalorder %s12, 0
    %p74 = por %p72, %p73
    %p75 = scmp.ne.s32.totalorder %s64, %s67
    %p76 = scmp.eq.s32.totalorder %s17, 1
    %p77 = por %p75, %p76
    %p78 = scmp.ne.s32.totalorder %s67, %s68
    %p79 = scmp.eq.s32.totalorder %s17, 0
    %p80 = por %p78, %p79
    %p81 = scmp.ne.s32.totalorder %s67, %s68
    %p82 = scmp.eq.s32.totalorder %s18, 1
    %p83 = por %p81, %p82
    %p85 = scmp.ne.s32.totalorder %s68, %s84
    %p86 = scmp.eq.s32.totalorder %s18, 0
    %p87 = por %p85, %p86
    %s89 = sadd.s32 %s88, 1
    %p92 = scmp.eq.s32.totalorder %s12, 1
    %p93 = scmp.ne.s32.totalorder %s88, %s90
    %p94 = scmp.eq.s32.totalorder %s12, 0
    %p95 = por %p93, %p94
    %p96 = scmp.ne.s32.totalorder %s88, %s90
    %p97 = scmp.eq.s32.totalorder %s17, 1
    %p98 = por %p96, %p97
    %p99 = scmp.ne.s32.totalorder %s90, %s91
    %p100 = scmp.eq.s32.totalorder %s17, 0
    %p101 = por %p99, %p100
    %p102 = scmp.ne.s32.totalorder %s90, %s91
    %p103 = scmp.eq.s32.totalorder %s18, 1
    %p104 = por %p102, %p103
    %p106 = scmp.ne.s32.totalorder %s91, %s105
    %p107 = scmp.eq.s32.totalorder %s18, 0
    %p108 = por %p106, %p107
    %s110 = sadd.s32 %s109, 1
    %p113 = scmp.eq.s32.totalorder %s12, 1
    %p114 = scmp.ne.s32.totalorder %s109, %s111
    %p115 = scmp.eq.s32.totalorder %s12, 0
    %p116 = por %p114, %p115
    %p117 = scmp.ne.s32.totalorder %s109, %s111
    %p118 = scmp.eq.s32.totalorder %s17, 1
    %p119 = por %p117, %p118
    %p120 = scmp.ne.s32.totalorder %s111, %s112
    %p121 = scmp.eq.s32.totalorder %s17, 0
    %p122 = por %p120, %p121
    %p123 = scmp.ne.s32.totalorder %s111, %s112
    %p124 = scmp.eq.s32.totalorder %s18, 1
    %p125 = por %p123, %p124
    %p127 = scmp.ne.s32.totalorder %s112, %s126
    %p128 = scmp.eq.s32.totalorder %s18, 0
    %p129 = por %p127, %p128
    %s131 = sadd.s32 %s130, 1
    %p134 = scmp.eq.s32.totalorder %s12, 1
    %p135 = scmp.ne.s32.totalorder %s130, %s132
    %p136 = scmp.eq.s32.totalorder %s12, 0
    %p137 = por %p135, %p136
    %p138 = scmp.ne.s32.totalorder %s130, %s132
    %p139 = scmp.eq.s32.totalorder %s17, 1
    %p140 = por %p138, %p139
    %p141 = scmp.ne.s32.totalorder %s132, %s133
    %p142 = scmp.eq.s32.totalorder %s17, 0
    %p143 = por %p141, %p142
    %p144 = scmp.ne.s32.totalorder %s132, %s133
    %p145 = scmp.eq.s32.totalorder %s18, 1
    %p146 = por %p144, %p145
    %p148 = scmp.ne.s32.totalorder %s133, %s147
    %p149 = scmp.eq.s32.totalorder %s18, 0
    %p150 = por %p148, %p149
    %s151 = ssub.s32 %s19, %s31
    %s152 = ssub.s32 %s20, %s27
    %s153 = sor.u32 %s151, %s152
    %p154 = scmp.eq.s32.totalorder %s153, 0
    %s156 = sadd.s32 %s155, 1
    %s157 = scalar_select %p154, %s155, %s156
    %p160 = pneg %p154
    %p161 = scmp.eq.s32.totalorder %s12, 1
    %p162 = por %p160, %p161
    %p163 = scmp.ne.s32.totalorder %s155, %s158
    %p164 = scmp.eq.s32.totalorder %s12, 0
    %p165 = por %p163, %p164
    %p166 = scmp.ne.s32.totalorder %s155, %s158
    %p167 = scmp.eq.s32.totalorder %s17, 1
    %p168 = por %p166, %p167
    %p169 = scmp.ne.s32.totalorder %s158, %s159
    %p170 = scmp.eq.s32.totalorder %s17, 0
    %p171 = por %p169, %p170
    %p172 = scmp.ne.s32.totalorder %s158, %s159
    %p173 = scmp.eq.s32.totalorder %s18, 1
    %p174 = por %p172, %p173
    %p176 = scmp.ne.s32.totalorder %s159, %s175
    %p177 = scmp.eq.s32.totalorder %s18, 0
    %p178 = por %p176, %p177
    %p179 = scmp.le.s32.totalorder 1, %s12
    %p180 = scmp.lt.s32.totalorder %s12, 3
    %p181 = pnand %p179, %p180
    %p182 = pneg %p181
    // Predicated region
    $region9: #{initial_block.3} parent=5 // pred_check
      _
    $region10: #{initial_block.3} parent=5 // pred_check_branch
      %184 = sbr.rel (%p181) target = $region12
    $region11: #{initial_block.3} parent=5 // pred_region
      %s185 = ssub.s32 %s12, 1
      // Predicated region
      $region13: #{initial_block.3} parent=11 // pred_check
        %p186 = pneg %p101
      $region14: #{initial_block.3} parent=11 // pred_check_branch
        %188 = sbr.rel (%p186) target = $region16
      $region15: #{initial_block.3} parent=11 // pred_region
        _
      $region16: #{initial_block.3} parent=11 // pred_fallthru
        _
      // Predicated region
      $region17: #{initial_block.3} parent=11 // pred_check
        %p189 = pneg %p122
      $region18: #{initial_block.3} parent=11 // pred_check_branch
        %191 = sbr.rel (%p189) target = $region20
      $region19: #{initial_block.3} parent=11 // pred_region
        _
      $region20: #{initial_block.3} parent=11 // pred_fallthru
        _
      // Predicated region
      $region21: #{initial_block.3} parent=11 // pred_check
        %p192 = pneg %p143
      $region22: #{initial_block.3} parent=11 // pred_check_branch
        %194 = sbr.rel (%p192) target = $region24
      $region23: #{initial_block.3} parent=11 // pred_region
        _
      $region24: #{initial_block.3} parent=11 // pred_fallthru
        _
    $region12: #{initial_block.3} parent=5 // pred_fallthru
      _
    %p195 = scmp.lt.s32.totalorder %s12, 2
    // Predicated region
    $region25: #{initial_block.3} parent=5 // pred_check
      %p196 = pneg %p195
    $region26: #{initial_block.3} parent=5 // pred_check_branch
      %198 = sbr.rel (%p196) target = $region28
    $region27: #{initial_block.3} parent=5 // pred_region
      // Predicated region
      $region29: #{initial_block.3} parent=27 // pred_check
        %p199 = pneg %p46
      $region30: #{initial_block.3} parent=27 // pred_check_branch
        %201 = sbr.rel (%p199) target = $region32
      $region31: #{initial_block.3} parent=27 // pred_region
        %p202 = scmp.lt.s32.totalorder %s19, 1
        %s203 = scalar_select %p202, %s19, 1
        %p204 = scmp.lt.s32.totalorder %s20, 0
        %s205 = scalar_select %p204, %s20, 0
        %s206 = smul.addr %s203, 2
        %s207 = sadd.s32 %s205, %s206
        %s208 = smul.addr %s207, 8
        %s209 = scalar_lea.vmem %s0, %s208
      $region32: #{initial_block.3} parent=27 // pred_fallthru
        _
      // Predicated region
      $region33: #{initial_block.3} parent=27 // pred_check
        %p210 = pneg %p74
      $region34: #{initial_block.3} parent=27 // pred_check_branch
        %212 = sbr.rel (%p210) target = $region36
      $region35: #{initial_block.3} parent=27 // pred_region
        %p213 = scmp.lt.s32.totalorder %s19, 1
        %s214 = scalar_select %p213, %s19, 1
        %p215 = scmp.lt.s32.totalorder %s20, 0
        %s216 = scalar_select %p215, %s20, 0
        %s217 = sadd.s32 %s216, %s214
        %s218 = smul.addr %s217, 4
        %s219 = scalar_lea.vmem %s1, %s218
      $region36: #{initial_block.3} parent=27 // pred_fallthru
        _
    $region28: #{initial_block.3} parent=5 // pred_fallthru
      _
    %p220 = scmp.le.s32.totalorder 1, %s12
    %p221 = scmp.lt.s32.totalorder %s12, 3
    %p222 = pnand %p220, %p221
    %p223 = pneg %p222
    // Predicated region
    $region37: #{initial_block.3} parent=5 // pred_check
      _
    $region38: #{initial_block.3} parent=5 // pred_check_branch
      %225 = sbr.rel (%p222) target = $region40
    $region39: #{initial_block.3} parent=5 // pred_region
      %s226 = ssub.s32 %s12, 1
      %p227 = scmp.lt.s32.totalorder %s21, 1
      %s228 = scalar_select %p227, %s21, 1
      %p229 = scmp.lt.s32.totalorder %s22, 0
      %s230 = scalar_select %p229, %s22, 0
      %s231 = smul.addr %s228, 2
      %s232 = sadd.s32 %s230, %s231
      %s233 = smul.addr %s232, 8
      %s234 = scalar_lea.vmem %s0, %s233
      %p235 = pneg %p52
      %p236 = pneg %p49
      %p237 = scmp.lt.s32.totalorder %s21, 1
      %s238 = scalar_select %p237, %s21, 1
      %p239 = scmp.lt.s32.totalorder %s22, 0
      %s240 = scalar_select %p239, %s22, 0
      %s241 = sadd.s32 %s240, %s238
      %s242 = smul.addr %s241, 4
      %s243 = scalar_lea.vmem %s1, %s242
      %p244 = pneg %p80
      %p245 = pneg %p77
      %p246 = pneg %p101
      %p247 = pneg %p98
      %p248 = pneg %p122
      %p249 = pneg %p119
      %p250 = pneg %p143
      %p251 = pneg %p140
      %p252 = pneg %p171
      %p253 = pneg %p168
      %p254 = scmp.lt.s32.totalorder %s21, 1
      %s255 = scalar_select %p254, %s21, 1
      %p256 = scmp.lt.s32.totalorder %s22, 0
      %s257 = scalar_select %p256, %s22, 0
      %s258 = smul.addr %s255, 2
      %s259 = sadd.s32 %s257, %s258
      %s260 = smul.addr %s259, 8
      %s261 = scalar_lea.vmem %s5, %s260
      %p262 = scmp.lt.s32.totalorder %s21, 1
      %s263 = scalar_select %p262, %s21, 1
      %p264 = scmp.lt.s32.totalorder %s22, 0
      %s265 = scalar_select %p264, %s22, 0
      %s266 = smul.addr %s263, 2
      %s267 = sadd.s32 %s265, %s266
      %s268 = smul.addr %s267, 8
      %s269 = scalar_lea.vmem %s0, %s268
      %p270 = scmp.lt.s32.totalorder %s21, 1
      %s271 = scalar_select %p270, %s21, 1
      %p272 = scmp.lt.s32.totalorder %s22, 0
      %s273 = scalar_select %p272, %s22, 0
      %s274 = sadd.s32 %s273, %s271
      %s275 = smul.addr %s274, 4
      %s276 = scalar_lea.vmem %s1, %s275
      %p277 = scmp.lt.s32.totalorder %s21, 1
      %s278 = scalar_select %p277, %s21, 1
      %p279 = scmp.lt.s32.totalorder %s22, 0
      %s280 = scalar_select %p279, %s22, 0
      %s281 = smul.addr %s278, 2
      %s282 = sadd.s32 %s280, %s281
      %s283 = smul.addr %s282, 8
      %s284 = scalar_lea.vmem %s5, %s283
      %v285 = vld [vmem:[%s269] sm:$0xff]
      %v286 = vld [vmem:[%s269 + $0x8] sm:$0x1f]
      %v287 = vld [vmem:[%s2] sm:$0xff]
      %v288 = vld [vmem:[%s2 + $0x8] sm:$0x1f]
      %290 = vset.pattern.permute.xlu0 0
      %291 = vperm.xlu0 %290, %v287
      %v292 = vpop.permute.xlu0 %291
      %295 = vset.pattern.permute.xlu0 0
      %296 = vperm.xlu0 %295, %v288
      %v297 = vpop.permute.xlu0 %296
      %v299 = vmul.f32 %v285, %v292
      %v300 = vmul.f32 %v286, %v297
      %v301 = vld [vmem:[%s3] sm:$0xff]
      %v302 = vld [vmem:[%s3 + $0x8] sm:$0x1f]
      %304 = vset.pattern.permute.xlu0 0
      %305 = vperm.xlu0 %304, %v301
      %v306 = vpop.permute.xlu0 %305
      %309 = vset.pattern.permute.xlu0 0
      %310 = vperm.xlu0 %309, %v302
      %v311 = vpop.permute.xlu0 %310
      %v313 = vadd.f32 %v299, %v306
      %v314 = vadd.f32 %v300, %v311
      %s315 = sld [smem:[#allocation2]]
      %vm316 = vcmp.gt.f32.partialorder %v313, 0.0
      %vm317 = vcmp.gt.f32.partialorder %v314, 0.0
      %v318 = vstv %s315
      %v319 = vmul.f32 %v318, %v313
      %v320 = vmul.f32 %v318, %v314
      %v321 = vsel %vm316, %v313, %v319
      %v322 = vsel %vm317, %v314, %v320
      %v323 = vld [vmem:[%s276] sm:$0x7]
      %v325 = vrot.slane %v323, 3
      %vm327 = vcmask 1044480
      %v328 = vsel %vm327, %v322, %v325
      %vm329 = vcmask 523264
      %330 = vst.msk [vmem:[%s284] sm:$0xff] %vm329, %v321
      %331 = vst.msk [vmem:[%s284 + $0x8] sm:$0xff] %vm329, %v328
      %p332 = scmp.lt.s32.totalorder %s21, 1
      %s333 = scalar_select %p332, %s21, 1
      %p334 = scmp.lt.s32.totalorder %s22, 0
      %s335 = scalar_select %p334, %s22, 0
      %s336 = smul.addr %s333, 2
      %s337 = sadd.s32 %s335, %s336
      %s338 = smul.addr %s337, 8
      %s339 = scalar_lea.vmem %s5, %s338
      // Predicated region
      $region41: #{initial_block.3} parent=39 // pred_check
        %p340 = pneg %p168
      $region42: #{initial_block.3} parent=39 // pred_check_branch
        %342 = sbr.rel (%p340) target = $region44
      $region43: #{initial_block.3} parent=39 // pred_region
        _
      $region44: #{initial_block.3} parent=39 // pred_fallthru
        _
    $region40: #{initial_block.3} parent=5 // pred_fallthru
      _
    %p343 = scmp.le.s32.totalorder 2, %s12
    // Predicated region
    $region45: #{initial_block.3} parent=5 // pred_check
      %p344 = pneg %p343
    $region46: #{initial_block.3} parent=5 // pred_check_branch
      %346 = sbr.rel (%p344) target = $region48
    $region47: #{initial_block.3} parent=5 // pred_region
      %s347 = ssub.s32 %s12, 2
      // Predicated region
      $region49: #{initial_block.3} parent=47 // pred_check
        %p348 = pneg %p174
      $region50: #{initial_block.3} parent=47 // pred_check_branch
        %350 = sbr.rel (%p348) target = $region52
      $region51: #{initial_block.3} parent=47 // pred_region
        %p351 = scmp.lt.s32.totalorder %s23, 1
        %s352 = scalar_select %p351, %s23, 1
        %p353 = scmp.lt.s32.totalorder %s24, 0
        %s354 = scalar_select %p353, %s24, 0
        %s355 = smul.addr %s352, 2
        %s356 = sadd.s32 %s354, %s355
        %s357 = smul.addr %s356, 8
        %s358 = scalar_lea.vmem %s5, %s357
      $region52: #{initial_block.3} parent=47 // pred_fallthru
        _
    $region48: #{initial_block.3} parent=5 // pred_fallthru
      _
  $region6: #{initial_block.3} parent=0 // loop_footer
    %s16 = sadd.s32 1, %s12
  $region7: #{initial_block.3} parent=0 // loop_footer_branch
    %11 = sbr.rel target = $region3
  $region8: #{initial_block.3} parent=0 // loop_exit
    _

</llo_original>
